<compile_context>
chip_gen: v7x
topology: tpu7x:2x2x1
jax: 0.10.0
libtpu: 0.0.40
codegen_flags: <defaults>
</compile_context>

<pallas_src>
import functools

import jax
import jax.numpy as jnp
from jax.experimental import pallas as pl
from jax.experimental.pallas import tpu as pltpu

S = 64.0   # scale from Softmax.__init__(s=64.0)
M = 0.4    # margin (unused in forward, kept for parity)

# Below this size the plain XLA multiply is strictly faster (and fuses away).
_FAST_PATH_MAX_BYTES = 1 << 20


def _vmem_budgets():
    """(per-buffer tile budget, scoped-VMEM limit), gated on the chip's VMEM."""
    per_buf, limit = 6 << 20, 32 << 20          # safe everywhere incl. v7x (64 MiB VMEM/TC)
    try:
        cap = getattr(pltpu.get_tpu_info(), "vmem_capacity_bytes", 64 << 20)
        if cap >= (128 << 20):                  # v5e / v6e headroom
            per_buf, limit = 8 << 20, 48 << 20
    except Exception:
        pass
    return per_buf, limit


def _pick_lane_width(total, max_lane_width):
    """Largest W <= max_lane_width with W % 128 == 0 and W | total."""
    q = total // 128
    for d in range(max(1, min(q, max_lane_width // 128)), 0, -1):
        if q % d == 0:
            return 128 * d
    return 128


def _pick_tile_rows(R, W, dtype, per_buf_budget):
    itemsize = jnp.dtype(dtype).itemsize
    sublane = max(8, 32 // itemsize)            # 8 rows/vreg f32, 16 bf16, 32 int8/fp8
    rows = per_buf_budget // (W * itemsize)
    rows = max(sublane, (rows // sublane) * sublane)
    if R <= rows:
        # Whole slab fits one block. Force >=2 blocks along the parallel axis
        # so v7x's 2 TensorCores both stream (no effect on v5e/v6e, 1 TC).
        if R >= 2 * sublane:
            half = ((R + 1) // 2 + sublane - 1) // sublane * sublane
            if half < R:
                return half
        return R
    return rows


def softmax_head_forward(cosine, label=None, *, s=S, donate_input=False,
                         force_pallas=False, tile_rows=None,
                         max_lane_width=32768):
    """Reproduces Softmax.forward(cosine, label) -> cosine * s.

    `label` is accepted (and ignored) to match the PyTorch signature.
    Set `donate_input=True` (ideally with jit donation of `cosine`) to scale
    in place via input_output_aliases. `tile_rows`/`max_lane_width` exist for
    sweeping; defaults pick large lane-dense tiles automatically.
    """
    shape, dtype = cosine.shape, cosine.dtype
    itemsize = jnp.dtype(dtype).itemsize
    total = 1
    for d in shape:
        total *= int(d)

    # Fast path: tiny or non-lane-divisible inputs -> plain XLA multiply
    # (fuses into neighbours; avoids custom-call overhead / masked stores).
    if (total % 128 != 0) or (total * itemsize < _FAST_PATH_MAX_BYTES
                              and not force_pallas):
        return cosine * jnp.asarray(s, dtype)

    per_buf, vmem_limit = _vmem_budgets()
    W = _pick_lane_width(total, max_lane_width)
    R = total // W
    tr = tile_rows if tile_rows is not None else _pick_tile_rows(R, W, dtype, per_buf)

    def _scale_kernel(cos_ref, out_ref):
        # Elementwise hot path; weakly-typed `s` keeps the input dtype.
        out_ref[...] = cos_ref[...] * s

    flat = cosine.reshape(R, W)                 # row-major reshape: free (bitcast)

    call_kwargs = {}
    if donate_input:
        # Alias output 0 onto input 0: scale in place when the buffer is donated.
        call_kwargs["input_output_aliases"] = {0: 0}

    out_flat = pl.pallas_call(
        _scale_kernel,
        out_shape=jax.ShapeDtypeStruct((R, W), dtype),
        grid_spec=pltpu.PrefetchScalarGridSpec(
            num_scalar_prefetch=0,
            grid=(pl.cdiv(R, tr),),
            in_specs=[pl.BlockSpec((tr, W), lambda i: (i, 0))],
            out_specs=pl.BlockSpec((tr, W), lambda i: (i, 0)),
        ),
        compiler_params=pltpu.CompilerParams(
            dimension_semantics=("parallel",),
            vmem_limit_bytes=vmem_limit,
        ),
        cost_estimate=pl.CostEstimate(
            flops=total, transcendentals=0,
            bytes_accessed=2 * total * itemsize),
        **call_kwargs,
    )(flat)
    return out_flat.reshape(shape)


if __name__ == "__main__":
    key = jax.random.PRNGKey(0)
    k1, k2, k3, k4 = jax.random.split(key, 4)

    # --- Case 1: f32 logits, Pallas streaming path (single lane-dense slab).
    batch, num_classes = 8, 512
    cosine = jax.random.uniform(k1, (batch, num_classes), dtype=jnp.float32,
                                minval=-1.0, maxval=1.0)
    label = jax.random.randint(k2, (batch,), 0, num_classes)
    out = jax.block_until_ready(softmax_head_forward(cosine, label, force_pallas=True))
    assert out.shape == cosine.shape and out.dtype == cosine.dtype
    assert jnp.allclose(out, cosine * S, atol=1e-6, rtol=1e-6)

    # --- Case 2: multi-block grid (exercises index_map + pipeline) and the
    # forced >=2-block split used for v7x's 2 TensorCores.
    cos_b = jax.random.uniform(k3, (64, 256), dtype=jnp.float32,
                               minval=-1.0, maxval=1.0)
    out_b = jax.block_until_ready(
        softmax_head_forward(cos_b, force_pallas=True, max_lane_width=128))
    out_c = jax.block_until_ready(
        softmax_head_forward(cos_b, force_pallas=True, max_lane_width=128, tile_rows=8))
    assert jnp.allclose(out_b, cos_b * S) and jnp.allclose(out_c, cos_b * S)

    # --- Case 3: bf16 + in-place scaling via donated input (input_output_aliases).
    cos_bf16 = jax.random.uniform(k4, (16, 384), dtype=jnp.float32,
                                  minval=-1.0, maxval=1.0).astype(jnp.bfloat16)
    ref_bf16 = cos_bf16 * jnp.bfloat16(S)       # *64 is a power of two -> exact in bf16
    f_inplace = jax.jit(
        functools.partial(softmax_head_forward, force_pallas=True, donate_input=True),
        donate_argnums=(0,))
    out_bf16 = jax.block_until_ready(f_inplace(cos_bf16))
    assert out_bf16.dtype == jnp.bfloat16
    assert jnp.array_equal(out_bf16, ref_bf16)

    # --- Case 4: tiny / non-128-divisible input -> XLA fast path.
    cos_small = jnp.linspace(-1.0, 1.0, 12 * 100, dtype=jnp.float32).reshape(12, 100)
    out_small = jax.block_until_ready(softmax_head_forward(cos_small))
    assert jnp.allclose(out_small, cos_small * S)

    print("KERNEL_OK")
</pallas_src>

<mosaic_0001>
module attributes {stable_mosaic.version = 11 : i64} {
  func.func @_scale_kernel(%arg0: i32, %arg1: memref<1x4096xf32, #tpu.memory_space<vmem>>, %arg2: memref<1x4096xf32, #tpu.memory_space<vmem>>) attributes {dimension_semantics = [#tpu.dimension_semantics<parallel>], iteration_bounds = array<i64: 1>, scalar_prefetch = 0 : i64, scratch_operands = 0 : i64, tpu.core_type = #tpu.core_type<tc>, window_params = [{transform_indices = @transform_0, window_bounds = array<i64: 1, 4096>}, {transform_indices = @transform_1, window_bounds = array<i64: 1, 4096>}]} {
    %c0 = arith.constant 0 : index
    %c0_0 = arith.constant 0 : index
    %0 = vector.load %arg1[%c0, %c0_0] : memref<1x4096xf32, #tpu.memory_space<vmem>>, vector<1x4096xf32>
    %cst = arith.constant 6.400000e+01 : f32
    %1 = vector.broadcast %cst : f32 to vector<1x4096xf32>
    %2 = arith.mulf %0, %1 : vector<1x4096xf32>
    %c0_1 = arith.constant 0 : index
    %c0_2 = arith.constant 0 : index
    %3 = vector.load %arg2[%c0_1, %c0_2] : memref<1x4096xf32, #tpu.memory_space<vmem>>, vector<1x4096xf32>
    tpu.vector_store %arg2[%c0_1, %c0_2], %2 {strides = array<i32>} : memref<1x4096xf32, #tpu.memory_space<vmem>>, vector<1x4096xf32>,
    return
  }
  func.func @transform_0(%arg0: i32) -> (i32, i32) {
    %c0_i32 = arith.constant 0 : i32
    %c0_i32_0 = arith.constant 0 : i32
    return %arg0, %c0_i32 : i32, i32
  }
  func.func @transform_1(%arg0: i32) -> (i32, i32) {
    %c0_i32 = arith.constant 0 : i32
    %c0_i32_0 = arith.constant 0 : i32
    return %arg0, %c0_i32 : i32, i32
  }
}

</mosaic_0001>

<llo_original>
// kernel: tpu_custom_call.1
$region0: #{tpu_custom_call.1}
  #allocation0 [shape = 'u32[]', space=smem, size = 0x4, offset = 0x4, fixed_abs, tag = 'smem constant byte address 0x4 - core index']
  #allocation1 [shape = 'u32[144,128]{1,0:T(1,128)}', space=vmem, size = 0x12000, scoped, tag = 'internal scratch']
  %s0 = inlined_call_operand.hbm [shape: f32[1,4096], index: 0, kind: input, shape index: {}]
  %s1 = inlined_call_operand.hbm [shape: f32[1,4096], index: 1, kind: output, shape index: {}]
  %s2 = sld [smem:[#allocation0]]
  $region18: #{tpu_custom_call.1} parent=0
    _
  %s4 = ssub.s32 1, %s2
  %s5 = scalar_select 0, %s4, %s2
  $region1: #{tpu_custom_call.1} parent=0
    #allocation2 [shape = 'u8[16384]{0}', space=vmem, size = 0x4000, scoped, tag = 'input window, operand 0, single buffered']
    #allocation3 [shape = 's32[1]{0}', space=sflag, size = 0x4, scoped, tag = 'scoped memory for tpu_custom_call.1']
    #allocation4 [shape = 's32[1]{0}', space=sflag, size = 0x4, scoped, tag = 'scoped memory for tpu_custom_call.1']
    #allocation5 [shape = 'u8[16384]{0}', space=vmem, size = 0x4000, scoped, tag = 'output window, operand 0, single buffered']
    %6 = vsyncpa [#allocation3], 0
    %7 = vsyncpa [#allocation4], 0
    // Predicated region
    $region2: #{tpu_custom_call.1} parent=1 // pred_check
      _
    $region3: #{tpu_custom_call.1} parent=1 // pred_check_branch
      %9 = sbr.rel (0) target = $region5
    $region4: #{tpu_custom_call.1} parent=1 // pred_region
      %s11 = ssub.s32 512, 512
      %12 = vsyncadd [#allocation3], %s11
      %s14 = sshll.u32 [#allocation2], 4
      %s15 = int_to_ptr.vmem [resolvable:$true] %s14
      %17 = dma.hbm_to_vmem [thread:$0]  %s0, 512, %s15, [#allocation3]
    $region5: #{tpu_custom_call.1} parent=1 // pred_fallthru
      _
    // Predicated region
    $region6: #{tpu_custom_call.1} parent=1 // pred_check
      _
    $region7: #{tpu_custom_call.1} parent=1 // pred_check_branch
      %19 = sbr.rel (0) target = $region9
    $region8: #{tpu_custom_call.1} parent=1 // pred_region
      %20 = dma.done [#allocation3], 512
    $region9: #{tpu_custom_call.1} parent=1 // pred_fallthru
      _
    %v21 = vld [vmem:[#allocation2] sm:$0xff]
    %v22 = vld [vmem:[#allocation2 + $0x8] sm:$0xff]
    %v23 = vld [vmem:[#allocation2 + $0x10] sm:$0xff]
    %v24 = vld [vmem:[#allocation2 + $0x18] sm:$0xff]
    %v25 = vmul.f32 %v21, 64.0
    %v26 = vmul.f32 %v22, 64.0
    %v27 = vmul.f32 %v23, 64.0
    %v28 = vmul.f32 %v24, 64.0
    %29 = vst [vmem:[#allocation5] sm:$0xff] %v25
    %30 = vst [vmem:[#allocation5 + $0x8] sm:$0xff] %v26
    %31 = vst [vmem:[#allocation5 + $0x10] sm:$0xff] %v27
    %32 = vst [vmem:[#allocation5 + $0x18] sm:$0xff] %v28
    // Predicated region
    $region10: #{tpu_custom_call.1} parent=1 // pred_check
      _
    $region11: #{tpu_custom_call.1} parent=1 // pred_check_branch
      %34 = sbr.rel (0) target = $region13
    $region12: #{tpu_custom_call.1} parent=1 // pred_region
      %s36 = ssub.s32 512, 512
      %37 = vsyncadd [#allocation4], %s36
      %s39 = sshll.u32 [#allocation5], 4
      %s40 = int_to_ptr.vmem [resolvable:$true] %s39
      %42 = dma.vmem_to_hbm [thread:$0]  %s40, 512, %s1, [#allocation4]
    $region13: #{tpu_custom_call.1} parent=1 // pred_fallthru
      _
    // Predicated region
    $region14: #{tpu_custom_call.1} parent=1 // pred_check
      _
    $region15: #{tpu_custom_call.1} parent=1 // pred_check_branch
      %44 = sbr.rel (0) target = $region17
    $region16: #{tpu_custom_call.1} parent=1 // pred_region
      %45 = dma.done [#allocation4], 512
    $region17: #{tpu_custom_call.1} parent=1 // pred_fallthru
      _
    %46 = vsyncpa [#allocation3], 1
    %47 = vsyncpa [#allocation4], 1

</llo_original>
